<compile_context>
chip_gen: v6e
topology: v6e:2x2x1
jax: 0.10.0
libtpu: 0.0.40
codegen_flags: <defaults>
</compile_context>

<pallas_src>
import functools

import jax
import jax.numpy as jnp
from jax.experimental import pallas as pl
from jax.experimental.pallas import tpu as pltpu


def linear_kernel(x_ref, w_ref, b_ref, o_ref):
    # x_ref: (tm, D)   w_ref: (D, C)   b_ref: (1, C)   o_ref: (tm, C)
    acc = jnp.dot(x_ref[...], w_ref[...], preferred_element_type=jnp.float32)
    o_ref[...] = (acc + b_ref[...].astype(jnp.float32)).astype(o_ref.dtype)


def _round_up(n, m):
    return ((n + m - 1) // m) * m


def _choose_tile(batch, block_rows):
    """Batch tile: multiple of 8, as large as block_rows, but capped so the grid
    keeps >=2 steps when possible (lets the 'parallel' axis use both v7x TCs)."""
    half = _round_up(max((batch + 1) // 2, 8), 8)
    return min(block_rows, half)


def prepare_params(w, b, *, compute_dtype=None):
    """One-time layout prep (hoisted out of the per-call forward).

    w: (num_class, 64) torch layout, b: (num_class,).
    Returns wt: (64, C_maybe_padded), b2d: (1, C_maybe_padded).
    """
    num_class, in_features = w.shape
    wt = jnp.transpose(w)  # (D, C), MXU-native (K, N)
    b2d = b.reshape(1, num_class)

    # Only pad the class dim when it is large AND not lane-aligned: padded,
    # lane-dense stores win there. For tiny num_class (e.g. 10) an unpadded
    # (tm, C) output block avoids ~12.8x write amplification + a slice pass.
    if num_class >= 128 and num_class % 128 != 0:
        c_pad = _round_up(num_class, 128)
        wt = jnp.pad(wt, ((0, 0), (0, c_pad - num_class)))
        b2d = jnp.pad(b2d, ((0, 0), (0, c_pad - num_class)))

    if compute_dtype is not None:
        wt = wt.astype(compute_dtype)
    return wt, b2d


@functools.partial(jax.jit, static_argnames=("num_class", "block_rows", "compute_dtype"))
def resnet_classifier_forward(x, wt, b2d, num_class, *, block_rows=4096,
                              compute_dtype=None):
    """x: (B, 64); wt, b2d from prepare_params(); returns (B, num_class) f32."""
    B, D = x.shape
    C = wt.shape[1]  # possibly lane-padded class dim

    # NOTE(perf review): for very small B this head is pure launch overhead and
    # should ideally be fused into the upstream global-pool kernel; kept as a
    # standalone Pallas call here so the kernel is exercised.
    if compute_dtype is not None:
        x = x.astype(compute_dtype)

    tm = _choose_tile(B, block_rows)
    grid = (pl.cdiv(B, tm),)

    itemsize = jnp.dtype(x.dtype).itemsize
    cost = pl.CostEstimate(
        flops=2 * B * D * C,
        transcendentals=0,
        bytes_accessed=(B * D + D * C + C) * itemsize + B * C * 4,
    )

    out = pl.pallas_call(
        linear_kernel,
        out_shape=jax.ShapeDtypeStruct((B, C), jnp.float32),
        grid=grid,
        in_specs=[
            pl.BlockSpec((tm, D), lambda i: (i, 0)),   # x rows, tiled on batch
            pl.BlockSpec((D, C), lambda i: (0, 0)),    # full weight every step (tiny)
            pl.BlockSpec((1, C), lambda i: (0, 0)),    # full bias every step
        ],
        out_specs=pl.BlockSpec((tm, C), lambda i: (i, 0)),
        compiler_params=pltpu.CompilerParams(
            dimension_semantics=("parallel",)),        # 2-TC shard on v7x
        cost_estimate=cost,
    )(x, wt, b2d)

    if C != num_class:  # only when classes were lane-padded (num_class >= 128)
        out = out[:, :num_class]
    return out


def init_params(key, num_class, in_features=64):
    # nn.Linear default init: U(-1/sqrt(fan_in), 1/sqrt(fan_in)) for weight & bias.
    kw, kb = jax.random.split(key)
    bound = 1.0 / jnp.sqrt(jnp.float32(in_features))
    w = jax.random.uniform(kw, (num_class, in_features), jnp.float32, -bound, bound)
    b = jax.random.uniform(kb, (num_class,), jnp.float32, -bound, bound)
    return w, b


if __name__ == "__main__":
    key = jax.random.PRNGKey(0)
    kx, kp = jax.random.split(key)

    num_class = 10
    batch = 8
    x = jax.random.normal(kx, (batch, 64), jnp.float32)
    w, b = init_params(kp, num_class)

    # One-time parameter layout prep (transpose / bias reshape), outside forward.
    wt, b2d = prepare_params(w, b)

    out = resnet_classifier_forward(x, wt, b2d, num_class)
    out = jax.block_until_ready(out)

    # Sanity check against plain JAX reference.
    ref = x @ w.T + b
    assert out.shape == (batch, num_class)
    assert jnp.allclose(out, ref, atol=1e-5, rtol=1e-5)

    print("KERNEL_OK")
</pallas_src>

<mosaic_0001>
module attributes {stable_mosaic.version = 11 : i64} {
  func.func @linear_kernel(%arg0: i32, %arg1: memref<8x64xf32, #tpu.memory_space<vmem>>, %arg2: memref<64x10xf32, #tpu.memory_space<vmem>>, %arg3: memref<1x10xf32, #tpu.memory_space<vmem>>, %arg4: memref<8x10xf32, #tpu.memory_space<vmem>>) attributes {dimension_semantics = [#tpu.dimension_semantics<parallel>], iteration_bounds = array<i64: 1>, scalar_prefetch = 0 : i64, scratch_operands = 0 : i64, tpu.core_type = #tpu.core_type<tc>, window_params = [{transform_indices = @transform_0, window_bounds = array<i64: 8, 64>}, {pipeline_mode = #tpu.pipeline_mode<synchronous>, transform_indices = @transform_1, window_bounds = array<i64: 64, 10>}, {pipeline_mode = #tpu.pipeline_mode<synchronous>, transform_indices = @transform_2, window_bounds = array<i64: 1, 10>}, {transform_indices = @transform_3, window_bounds = array<i64: 8, 10>}]} {
    %c0 = arith.constant 0 : index
    %c0_0 = arith.constant 0 : index
    %0 = vector.load %arg1[%c0, %c0_0] : memref<8x64xf32, #tpu.memory_space<vmem>>, vector<8x64xf32>
    %c0_1 = arith.constant 0 : index
    %c0_2 = arith.constant 0 : index
    %1 = vector.load %arg2[%c0_1, %c0_2] : memref<64x10xf32, #tpu.memory_space<vmem>>, vector<64x10xf32>
    %cst = arith.constant dense<0.000000e+00> : vector<8x10xf32>
    %2 = tpu.matmul %0, %1, %cst {dimension_numbers = #tpu.dot_dimension_numbers<[1], [0], [0], [1], [0, 0, 1, 1], [], []>} : vector<8x64xf32>, vector<64x10xf32>, vector<8x10xf32> -> vector<8x10xf32>
    %c0_3 = arith.constant 0 : index
    %c0_4 = arith.constant 0 : index
    %3 = vector.load %arg3[%c0_3, %c0_4] : memref<1x10xf32, #tpu.memory_space<vmem>>, vector<1x10xf32>
    %4 = vector.broadcast %3 : vector<1x10xf32> to vector<8x10xf32>
    %5 = arith.addf %2, %4 : vector<8x10xf32>
    %c0_5 = arith.constant 0 : index
    %c0_6 = arith.constant 0 : index
    %6 = vector.load %arg4[%c0_5, %c0_6] : memref<8x10xf32, #tpu.memory_space<vmem>>, vector<8x10xf32>
    tpu.vector_store %arg4[%c0_5, %c0_6], %5 {strides = array<i32>} : memref<8x10xf32, #tpu.memory_space<vmem>>, vector<8x10xf32>,
    return
  }
  func.func @transform_0(%arg0: i32) -> (i32, i32) {
    %c0_i32 = arith.constant 0 : i32
    %c0_i32_0 = arith.constant 0 : i32
    return %arg0, %c0_i32 : i32, i32
  }
  func.func @transform_1(%arg0: i32) -> (i32, i32) {
    %c0_i32 = arith.constant 0 : i32
    %c0_i32_0 = arith.constant 0 : i32
    %c0_i32_1 = arith.constant 0 : i32
    return %c0_i32, %c0_i32_0 : i32, i32
  }
  func.func @transform_2(%arg0: i32) -> (i32, i32) {
    %c0_i32 = arith.constant 0 : i32
    %c0_i32_0 = arith.constant 0 : i32
    %c0_i32_1 = arith.constant 0 : i32
    return %c0_i32, %c0_i32_0 : i32, i32
  }
  func.func @transform_3(%arg0: i32) -> (i32, i32) {
    %c0_i32 = arith.constant 0 : i32
    %c0_i32_0 = arith.constant 0 : i32
    return %arg0, %c0_i32 : i32, i32
  }
}

</mosaic_0001>

<llo_original>
// kernel: resnet_classifier_forward.1
$region0: #{resnet_classifier_forward.1}
  #allocation0 [shape = 'u32[]', space=smem, size = 0x4, offset = 0x4, fixed_abs, tag = 'smem constant byte address 0x4 - core index']
  #allocation1 [shape = 'u32[144,128]{1,0:T(1,128)}', space=vmem, size = 0x12000, scoped, tag = 'internal scratch']
  %s0 = inlined_call_operand.vmem [shape: f32[8,64], index: 0, kind: input, shape index: {}]
  %s1 = inlined_call_operand.vmem [shape: f32[64,10], index: 1, kind: input, shape index: {}]
  %s2 = inlined_call_operand.vmem [shape: f32[1,10], index: 2, kind: input, shape index: {}]
  %s3 = inlined_call_operand.hbm [shape: f32[8,10], index: 3, kind: output, shape index: {}]
  %s4 = sld [smem:[#allocation0]]
  $region22: #{resnet_classifier_forward.1} parent=0
    _
  %s6 = ssub.s32 1, %s4
  %s7 = scalar_select 0, %s6, %s4
  $region1: #{resnet_classifier_forward.1} parent=0
    #allocation2 [shape = 'u8[4096]{0}', space=vmem, size = 0x1000, scoped, tag = 'output window, operand 0, single buffered']
    #allocation3 [shape = 's32[1]{0}', space=sflag, size = 0x4, scoped, tag = 'scoped memory for resnet_classifier_forward.1']
    %8 = vsyncpa [#allocation3], 0
    // Predicated region
    $region2: #{resnet_classifier_forward.1} parent=1 // pred_check
      _
    $region3: #{resnet_classifier_forward.1} parent=1 // pred_check_branch
      %10 = sbr.rel (0) target = $region5
    $region4: #{resnet_classifier_forward.1} parent=1 // pred_region
      _
    $region5: #{resnet_classifier_forward.1} parent=1 // pred_fallthru
      _
    // Predicated region
    $region6: #{resnet_classifier_forward.1} parent=1 // pred_check
      _
    $region7: #{resnet_classifier_forward.1} parent=1 // pred_check_branch
      %12 = sbr.rel (0) target = $region9
    $region8: #{resnet_classifier_forward.1} parent=1 // pred_region
      _
    $region9: #{resnet_classifier_forward.1} parent=1 // pred_fallthru
      _
    // Predicated region
    $region10: #{resnet_classifier_forward.1} parent=1 // pred_check
      _
    $region11: #{resnet_classifier_forward.1} parent=1 // pred_check_branch
      %14 = sbr.rel (0) target = $region13
    $region12: #{resnet_classifier_forward.1} parent=1 // pred_region
      _
    $region13: #{resnet_classifier_forward.1} parent=1 // pred_fallthru
      _
    %v15 = vld [vmem:[%s0] sm:$0xff]
    %v16 = vld [vmem:[%s1] sm:$0xff]
    %v17 = vld [vmem:[%s1 + $0x8] sm:$0xff]
    %v18 = vld [vmem:[%s1 + $0x10] sm:$0xff]
    %v19 = vld [vmem:[%s1 + $0x18] sm:$0xff]
    %v20 = vld [vmem:[%s1 + $0x20] sm:$0xff]
    %v21 = vld [vmem:[%s1 + $0x28] sm:$0xff]
    %v22 = vld [vmem:[%s1 + $0x30] sm:$0xff]
    %v23 = vld [vmem:[%s1 + $0x38] sm:$0xff]
    %v24 = vld [vmem:[%s2] sm:$0x1]
    %v26 = vlaneseq
    %v27 = vshrl.u32 %v26, 7
    %v28 = vsub.s32 0, %v27
    %v29 = vrot.slane %v24, %v28
    %vm31 = vcmask 523264
    %v33 = vsel %vm31, %v15, 0
    %35 = vmatprep.subr.mxu0 0.0
    %36 = vmatpush1.msra.mxu0 0.0
    %37 = vmatprep.subr.mxu0 0.0
    %38 = vmatpush1.msra.mxu0 0.0
    %39 = vmatprep.subr.mxu0 0.0
    %40 = vmatpush1.msra.mxu0 0.0
    %41 = vmatprep.subr.mxu0 0.0
    %42 = vmatpush1.msra.mxu0 0.0
    %43 = vmatprep.subr.mxu0 0.0
    %44 = vmatpush1.msra.mxu0 0.0
    %45 = vmatprep.subr.mxu0 0.0
    %46 = vmatpush1.msra.mxu0 0.0
    %47 = vmatprep.subr.mxu0 0.0
    %48 = vmatpush1.msra.mxu0 0.0
    %49 = vmatprep.subr.mxu0 0.0
    %50 = vmatpush1.msra.mxu0 0.0
    %51 = vmatprep.subr.mxu0 0.0
    %52 = vmatpush1.msra.mxu0 %v23
    %53 = vmatprep.subr.mxu0 0.0
    %54 = vmatpush1.msra.mxu0 %v22
    %55 = vmatprep.subr.mxu0 0.0
    %56 = vmatpush1.msra.mxu0 %v21
    %57 = vmatprep.subr.mxu0 0.0
    %58 = vmatpush1.msra.mxu0 %v20
    %59 = vmatprep.subr.mxu0 0.0
    %60 = vmatpush1.msra.mxu0 %v19
    %61 = vmatprep.subr.mxu0 0.0
    %62 = vmatpush1.msra.mxu0 %v18
    %63 = vmatprep.subr.mxu0 0.0
    %64 = vmatpush1.msra.mxu0 %v17
    %65 = vmatprep.subr.mxu0 0.0
    %66 = vmatpush1.msra.mxu0 %v16
    %67 = vmatprep.subr.mxu0 0.0
    %68 = vmatpush2.msra.mxu0 0.0
    %69 = vmatprep.subr.mxu0 0.0
    %70 = vmatpush2.msra.mxu0 0.0
    %71 = vmatprep.subr.mxu0 0.0
    %72 = vmatpush2.msra.mxu0 0.0
    %73 = vmatprep.subr.mxu0 0.0
    %74 = vmatpush2.msra.mxu0 0.0
    %75 = vmatprep.subr.mxu0 0.0
    %76 = vmatpush2.msra.mxu0 0.0
    %77 = vmatprep.subr.mxu0 0.0
    %78 = vmatpush2.msra.mxu0 0.0
    %79 = vmatprep.subr.mxu0 0.0
    %80 = vmatpush2.msra.mxu0 0.0
    %81 = vmatprep.subr.mxu0 0.0
    %82 = vmatpush2.msra.mxu0 0.0
    %83 = vmatprep.subr.mxu0 0.0
    %84 = vmatpush2.msra.mxu0 0.0
    %85 = vmatprep.subr.mxu0 0.0
    %86 = vmatpush2.msra.mxu0 0.0
    %87 = vmatprep.subr.mxu0 0.0
    %88 = vmatpush2.msra.mxu0 0.0
    %89 = vmatprep.subr.mxu0 0.0
    %90 = vmatpush2.msra.mxu0 0.0
    %91 = vmatprep.subr.mxu0 0.0
    %92 = vmatpush2.msra.mxu0 0.0
    %93 = vmatprep.subr.mxu0 0.0
    %94 = vmatpush2.msra.mxu0 0.0
    %95 = vmatprep.subr.mxu0 0.0
    %96 = vmatpush2.msra.mxu0 0.0
    %97 = vmatprep.subr.mxu0 0.0
    %98 = vmatpush2.msra.mxu0 0.0
    %99 = vmatprep.mubr.f32.mxu0 0.0
    %100 = vmatmul.mubr.f32.gmra.mxu0 %v33
    %v101 = vpop.f32.mrf.mxu0
    %v102 = vadd.f32 %v29, %v101
    %v103 = vpop.f32.mrf.mxu0
    %104 = vdwg.mxu0
    %vm105 = vcmask 80896
    %106 = vst.msk [vmem:[#allocation2] sm:$0xff] %vm105, %v102
    // Predicated region
    $region14: #{resnet_classifier_forward.1} parent=1 // pred_check
      _
    $region15: #{resnet_classifier_forward.1} parent=1 // pred_check_branch
      %108 = sbr.rel (0) target = $region17
    $region16: #{resnet_classifier_forward.1} parent=1 // pred_region
      %s110 = ssub.s32 128, 128
      %111 = vsyncadd [#allocation3], %s110
      %s113 = sshll.u32 [#allocation2], 4
      %s114 = int_to_ptr.vmem [resolvable:$true] %s113
      %116 = dma.vmem_to_hbm [thread:$0]  %s114, 128, %s3, [#allocation3]
    $region17: #{resnet_classifier_forward.1} parent=1 // pred_fallthru
      _
    // Predicated region
    $region18: #{resnet_classifier_forward.1} parent=1 // pred_check
      _
    $region19: #{resnet_classifier_forward.1} parent=1 // pred_check_branch
      %118 = sbr.rel (0) target = $region21
    $region20: #{resnet_classifier_forward.1} parent=1 // pred_region
      %119 = dma.done [#allocation3], 128
    $region21: #{resnet_classifier_forward.1} parent=1 // pred_fallthru
      _
    %120 = vsyncpa [#allocation3], 1

</llo_original>
